<compile_context>
chip_gen: v5e
topology: v5e:2x2
jax: 0.10.0
libtpu: 0.0.40
codegen_flags: <defaults>
</compile_context>

<pallas_src>
import math
import functools

import jax
import jax.numpy as jnp
from jax.experimental import pallas as pl
from jax.experimental.pallas import tpu as pltpu


# ----------------------------------------------------------------------------
# Pallas kernel: one block of groups per grid step
# ----------------------------------------------------------------------------
def local_op_kernel(x_ref, w1_ref, w2_ref, sh1_ref, sh2_ref, o_ref, *, rows, s):
    # x_ref: (rows*s, d) float32 rows, channels on lanes.
    x = x_ref[...]

    # conv1 (BN1 scale pre-folded into w1) -> + shift -> relu
    h = jnp.dot(x.astype(jnp.bfloat16), w1_ref[...],
                preferred_element_type=jnp.float32)          # (rows*s, C)
    h = jnp.maximum(h + sh1_ref[...], 0.0)

    # conv2 (BN2 scale pre-folded into w2) -> + shift -> relu
    h = jnp.dot(h.astype(jnp.bfloat16), w2_ref[...],
                preferred_element_type=jnp.float32)          # (rows*s, C)
    h = jnp.maximum(h + sh2_ref[...], 0.0)

    # max-pool over the s positions of every group
    pooled = jnp.max(h.reshape(rows, s, h.shape[-1]), axis=1)  # (rows, C)
    o_ref[...] = pooled.astype(o_ref.dtype)


# ----------------------------------------------------------------------------
# Wrapper
# ----------------------------------------------------------------------------
def local_op(x, w1, w2, bn1, bn2, *, rows_per_block=None, eps=1e-5):
    """x: (b, n, s, d); w1: (C, d); w2: (C, C); bn*: (gamma, beta, mean, var)."""
    b, n, s, d = x.shape
    C = w1.shape[0]
    M = b * n

    # ---- fold eval-mode BatchNorm into the conv weights (wrapper-side) ----
    g1, b1, m1, v1 = bn1
    g2, b2, m2, v2 = bn2
    sc1 = g1 / jnp.sqrt(v1 + eps)
    sc2 = g2 / jnp.sqrt(v2 + eps)
    sh1 = (b1 - m1 * sc1).reshape(1, C).astype(jnp.float32)
    sh2 = (b2 - m2 * sc2).reshape(1, C).astype(jnp.float32)
    w1t = (w1 * sc1[:, None]).T.astype(jnp.bfloat16)   # (d, C), bf16 MXU operand
    w2t = (w2 * sc2[:, None]).T.astype(jnp.bfloat16)   # (C, C), bf16 MXU operand

    # ---- choose how many groups each grid step handles ----
    if rows_per_block is None:
        rows_per_block = 1
        for cand in (64, 32, 16, 8, 4, 2, 1):
            if cand <= M and M % cand == 0:
                rows_per_block = cand
                break
    assert M % rows_per_block == 0, "rows_per_block must divide b*n"
    grid = (M // rows_per_block,)

    # Flatten to a row matrix: row = (batch, group, position), columns = d.
    x2 = x.reshape(M * s, d).astype(jnp.float32)

    kernel = functools.partial(local_op_kernel, rows=rows_per_block, s=s)
    out = pl.pallas_call(
        kernel,
        out_shape=jax.ShapeDtypeStruct((M, C), jnp.float32),
        grid=grid,
        in_specs=[
            pl.BlockSpec((rows_per_block * s, d), lambda i: (i, 0)),
            pl.BlockSpec((d, C), lambda i: (0, 0)),
            pl.BlockSpec((C, C), lambda i: (0, 0)),
            pl.BlockSpec((1, C), lambda i: (0, 0)),
            pl.BlockSpec((1, C), lambda i: (0, 0)),
        ],
        out_specs=pl.BlockSpec((rows_per_block, C), lambda i: (i, 0)),
        compiler_params=pltpu.CompilerParams(
            dimension_semantics=("parallel",)),
    )(x2, w1t, w2t, sh1, sh2)

    # (b*n, C) -> (b, C, n)   (matches the PyTorch reshape/permute epilogue)
    return out.reshape(b, n, C).transpose(0, 2, 1)


# ----------------------------------------------------------------------------
# Pure-JAX reference mirroring the PyTorch forward (f32 everywhere)
# ----------------------------------------------------------------------------
def reference_local_op(x, w1, w2, bn1, bn2, eps=1e-5):
    b, n, s, d = x.shape
    C = w1.shape[0]
    xr = jnp.transpose(x, (0, 1, 3, 2)).reshape(b * n, d, s)

    def bn(h, params):
        g, bta, m, v = params
        sc = (g / jnp.sqrt(v + eps))[None, :, None]
        return (h - m[None, :, None]) * sc + bta[None, :, None]

    h = jnp.einsum("od,bds->bos", w1, xr)
    h = jnp.maximum(bn(h, bn1), 0.0)
    h = jnp.einsum("oc,bcs->bos", w2, h)
    h = jnp.maximum(bn(h, bn2), 0.0)
    pooled = jnp.max(h, axis=2)                         # (b*n, C)
    return pooled.reshape(b, n, C).transpose(0, 2, 1)   # (b, C, n)


if __name__ == "__main__":
    b, n, s, d, C = 2, 8, 16, 32, 64    # in_channels=d=32, out_channels=C=64

    key = jax.random.PRNGKey(0)
    ks = jax.random.split(key, 11)
    x = jax.random.normal(ks[0], (b, n, s, d), jnp.float32)
    w1 = jax.random.normal(ks[1], (C, d), jnp.float32) / math.sqrt(d)
    w2 = jax.random.normal(ks[2], (C, C), jnp.float32) / math.sqrt(C)
    bn1 = (
        1.0 + 0.1 * jax.random.normal(ks[3], (C,), jnp.float32),
        0.1 * jax.random.normal(ks[4], (C,), jnp.float32),
        0.1 * jax.random.normal(ks[5], (C,), jnp.float32),
        1.0 + 0.1 * jnp.abs(jax.random.normal(ks[6], (C,), jnp.float32)),
    )
    bn2 = (
        1.0 + 0.1 * jax.random.normal(ks[7], (C,), jnp.float32),
        0.1 * jax.random.normal(ks[8], (C,), jnp.float32),
        0.1 * jax.random.normal(ks[9], (C,), jnp.float32),
        1.0 + 0.1 * jnp.abs(jax.random.normal(ks[10], (C,), jnp.float32)),
    )

    out = jax.block_until_ready(local_op(x, w1, w2, bn1, bn2))
    ref = jax.block_until_ready(reference_local_op(x, w1, w2, bn1, bn2))

    assert out.shape == (b, C, n)
    if not bool(jnp.allclose(out, ref, rtol=2e-2, atol=3e-2)):
        raise AssertionError("Pallas kernel does not match reference")
    print("KERNEL_OK")
</pallas_src>

<mosaic_0001>
module attributes {stable_mosaic.version = 11 : i64} {
  func.func @local_op_kernel(%arg0: i32, %arg1: memref<256x32xf32, #tpu.memory_space<vmem>>, %arg2: memref<32x64xbf16, #tpu.memory_space<vmem>>, %arg3: memref<64x64xbf16, #tpu.memory_space<vmem>>, %arg4: memref<1x64xf32, #tpu.memory_space<vmem>>, %arg5: memref<1x64xf32, #tpu.memory_space<vmem>>, %arg6: memref<16x64xf32, #tpu.memory_space<vmem>>) attributes {dimension_semantics = [#tpu.dimension_semantics<parallel>], iteration_bounds = array<i64: 1>, scalar_prefetch = 0 : i64, scratch_operands = 0 : i64, tpu.core_type = #tpu.core_type<tc>, window_params = [{transform_indices = @transform_0, window_bounds = array<i64: 256, 32>}, {pipeline_mode = #tpu.pipeline_mode<synchronous>, transform_indices = @transform_1, window_bounds = array<i64: 32, 64>}, {pipeline_mode = #tpu.pipeline_mode<synchronous>, transform_indices = @transform_2, window_bounds = array<i64: 64, 64>}, {pipeline_mode = #tpu.pipeline_mode<synchronous>, transform_indices = @transform_3, window_bounds = array<i64: 1, 64>}, {pipeline_mode = #tpu.pipeline_mode<synchronous>, transform_indices = @transform_4, window_bounds = array<i64: 1, 64>}, {transform_indices = @transform_5, window_bounds = array<i64: 16, 64>}]} {
    %c0 = arith.constant 0 : index
    %c0_0 = arith.constant 0 : index
    %0 = vector.load %arg1[%c0, %c0_0] : memref<256x32xf32, #tpu.memory_space<vmem>>, vector<256x32xf32>
    %1 = arith.truncf %0 : vector<256x32xf32> to vector<256x32xbf16>
    %c0_1 = arith.constant 0 : index
    %c0_2 = arith.constant 0 : index
    %2 = vector.load %arg2[%c0_1, %c0_2] : memref<32x64xbf16, #tpu.memory_space<vmem>>, vector<32x64xbf16>
    %cst = arith.constant dense<0.000000e+00> : vector<256x64xf32>
    %3 = tpu.matmul %1, %2, %cst {dimension_numbers = #tpu.dot_dimension_numbers<[1], [0], [0], [1], [0, 0, 1, 1], [], []>} : vector<256x32xbf16>, vector<32x64xbf16>, vector<256x64xf32> -> vector<256x64xf32>
    %c0_3 = arith.constant 0 : index
    %c0_4 = arith.constant 0 : index
    %4 = vector.load %arg4[%c0_3, %c0_4] : memref<1x64xf32, #tpu.memory_space<vmem>>, vector<1x64xf32>
    %5 = vector.broadcast %4 : vector<1x64xf32> to vector<256x64xf32>
    %6 = arith.addf %3, %5 : vector<256x64xf32>
    %cst_5 = arith.constant 0.000000e+00 : f32
    %7 = vector.broadcast %cst_5 : f32 to vector<256x64xf32>
    %8 = arith.maximumf %6, %7 : vector<256x64xf32>
    %9 = arith.truncf %8 : vector<256x64xf32> to vector<256x64xbf16>
    %c0_6 = arith.constant 0 : index
    %c0_7 = arith.constant 0 : index
    %10 = vector.load %arg3[%c0_6, %c0_7] : memref<64x64xbf16, #tpu.memory_space<vmem>>, vector<64x64xbf16>
    %cst_8 = arith.constant dense<0.000000e+00> : vector<256x64xf32>
    %11 = tpu.matmul %9, %10, %cst_8 {dimension_numbers = #tpu.dot_dimension_numbers<[1], [0], [0], [1], [0, 0, 1, 1], [], []>} : vector<256x64xbf16>, vector<64x64xbf16>, vector<256x64xf32> -> vector<256x64xf32>
    %c0_9 = arith.constant 0 : index
    %c0_10 = arith.constant 0 : index
    %12 = vector.load %arg5[%c0_9, %c0_10] : memref<1x64xf32, #tpu.memory_space<vmem>>, vector<1x64xf32>
    %13 = vector.broadcast %12 : vector<1x64xf32> to vector<256x64xf32>
    %14 = arith.addf %11, %13 : vector<256x64xf32>
    %cst_11 = arith.constant 0.000000e+00 : f32
    %15 = vector.broadcast %cst_11 : f32 to vector<256x64xf32>
    %16 = arith.maximumf %14, %15 : vector<256x64xf32>
    %17 = vector.shape_cast %16 : vector<256x64xf32> to vector<16x16x64xf32>
    %cst_12 = arith.constant dense<0xFF800000> : vector<16x64xf32>
    %18 = vector.multi_reduction <maximumf>, %17, %cst_12 [1] : vector<16x16x64xf32> to vector<16x64xf32>
    %c0_13 = arith.constant 0 : index
    %c0_14 = arith.constant 0 : index
    %19 = vector.load %arg6[%c0_13, %c0_14] : memref<16x64xf32, #tpu.memory_space<vmem>>, vector<16x64xf32>
    tpu.vector_store %arg6[%c0_13, %c0_14], %18 {strides = array<i32>} : memref<16x64xf32, #tpu.memory_space<vmem>>, vector<16x64xf32>,
    return
  }
  func.func @transform_0(%arg0: i32) -> (i32, i32) {
    %c0_i32 = arith.constant 0 : i32
    %c0_i32_0 = arith.constant 0 : i32
    return %arg0, %c0_i32 : i32, i32
  }
  func.func @transform_1(%arg0: i32) -> (i32, i32) {
    %c0_i32 = arith.constant 0 : i32
    %c0_i32_0 = arith.constant 0 : i32
    %c0_i32_1 = arith.constant 0 : i32
    return %c0_i32, %c0_i32_0 : i32, i32
  }
  func.func @transform_2(%arg0: i32) -> (i32, i32) {
    %c0_i32 = arith.constant 0 : i32
    %c0_i32_0 = arith.constant 0 : i32
    %c0_i32_1 = arith.constant 0 : i32
    return %c0_i32, %c0_i32_0 : i32, i32
  }
  func.func @transform_3(%arg0: i32) -> (i32, i32) {
    %c0_i32 = arith.constant 0 : i32
    %c0_i32_0 = arith.constant 0 : i32
    %c0_i32_1 = arith.constant 0 : i32
    return %c0_i32, %c0_i32_0 : i32, i32
  }
  func.func @transform_4(%arg0: i32) -> (i32, i32) {
    %c0_i32 = arith.constant 0 : i32
    %c0_i32_0 = arith.constant 0 : i32
    %c0_i32_1 = arith.constant 0 : i32
    return %c0_i32, %c0_i32_0 : i32, i32
  }
  func.func @transform_5(%arg0: i32) -> (i32, i32) {
    %c0_i32 = arith.constant 0 : i32
    %c0_i32_0 = arith.constant 0 : i32
    return %arg0, %c0_i32 : i32, i32
  }
}

</mosaic_0001>

<llo_original>
// kernel: tpu_custom_call.1
$region0: #{tpu_custom_call.1}
  #allocation0 [shape = 'u32[]', space=smem, size = 0x4, offset = 0x4, fixed_abs, tag = 'smem constant byte address 0x4 - core index']
  #allocation1 [shape = 'u32[72,128]{1,0:T(1,128)}', space=vmem, size = 0x9000, scoped, tag = 'internal scratch']
  %s0 = inlined_call_operand.vmem [shape: f32[256,32], index: 0, kind: input, shape index: {}]
  %s1 = inlined_call_operand.vmem [shape: bf16[32,64], index: 1, kind: input, shape index: {}]
  %s2 = inlined_call_operand.vmem [shape: bf16[64,64], index: 2, kind: input, shape index: {}]
  %s3 = inlined_call_operand.vmem [shape: f32[1,64], index: 3, kind: input, shape index: {}]
  %s4 = inlined_call_operand.vmem [shape: f32[1,64], index: 4, kind: input, shape index: {}]
  %s5 = inlined_call_operand.hbm [shape: f32[16,64], index: 5, kind: output, shape index: {}]
  %s6 = sld [smem:[#allocation0]]
  $region30: #{tpu_custom_call.1} parent=0
    _
  %s8 = ssub.s32 1, %s6
  %s9 = scalar_select 0, %s8, %s6
  $region1: #{tpu_custom_call.1} parent=0
    #allocation2 [shape = 'u8[8192]{0}', space=vmem, size = 0x2000, scoped, tag = 'output window, operand 0, single buffered']
    #allocation3 [shape = 's32[1]{0}', space=sflag, size = 0x4, scoped, tag = 'scoped memory for tpu_custom_call.1']
    %10 = vsyncpa [#allocation3], 0
    // Predicated region
    $region2: #{tpu_custom_call.1} parent=1 // pred_check
      _
    $region3: #{tpu_custom_call.1} parent=1 // pred_check_branch
      %12 = sbr.rel (0) target = $region5
    $region4: #{tpu_custom_call.1} parent=1 // pred_region
      _
    $region5: #{tpu_custom_call.1} parent=1 // pred_fallthru
      _
    // Predicated region
    $region6: #{tpu_custom_call.1} parent=1 // pred_check
      _
    $region7: #{tpu_custom_call.1} parent=1 // pred_check_branch
      %14 = sbr.rel (0) target = $region9
    $region8: #{tpu_custom_call.1} parent=1 // pred_region
      _
    $region9: #{tpu_custom_call.1} parent=1 // pred_fallthru
      _
    // Predicated region
    $region10: #{tpu_custom_call.1} parent=1 // pred_check
      _
    $region11: #{tpu_custom_call.1} parent=1 // pred_check_branch
      %16 = sbr.rel (0) target = $region13
    $region12: #{tpu_custom_call.1} parent=1 // pred_region
      _
    $region13: #{tpu_custom_call.1} parent=1 // pred_fallthru
      _
    // Predicated region
    $region14: #{tpu_custom_call.1} parent=1 // pred_check
      _
    $region15: #{tpu_custom_call.1} parent=1 // pred_check_branch
      %18 = sbr.rel (0) target = $region17
    $region16: #{tpu_custom_call.1} parent=1 // pred_region
      _
    $region17: #{tpu_custom_call.1} parent=1 // pred_fallthru
      _
    // Predicated region
    $region18: #{tpu_custom_call.1} parent=1 // pred_check
      _
    $region19: #{tpu_custom_call.1} parent=1 // pred_check_branch
      %20 = sbr.rel (0) target = $region21
    $region20: #{tpu_custom_call.1} parent=1 // pred_region
      _
    $region21: #{tpu_custom_call.1} parent=1 // pred_fallthru
      _
    %v22 = vld [vmem:[%s0] sm:$0xff]
    %v23 = vld [vmem:[%s0 + $0x8] sm:$0xff]
    %v24 = vld [vmem:[%s0 + $0x10] sm:$0xff]
    %v25 = vld [vmem:[%s0 + $0x18] sm:$0xff]
    %v26 = vld [vmem:[%s0 + $0x20] sm:$0xff]
    %v27 = vld [vmem:[%s0 + $0x28] sm:$0xff]
    %v28 = vld [vmem:[%s0 + $0x30] sm:$0xff]
    %v29 = vld [vmem:[%s0 + $0x38] sm:$0xff]
    %v30 = vld [vmem:[%s0 + $0x40] sm:$0xff]
    %v31 = vld [vmem:[%s0 + $0x48] sm:$0xff]
    %v32 = vld [vmem:[%s0 + $0x50] sm:$0xff]
    %v33 = vld [vmem:[%s0 + $0x58] sm:$0xff]
    %v34 = vld [vmem:[%s0 + $0x60] sm:$0xff]
    %v35 = vld [vmem:[%s0 + $0x68] sm:$0xff]
    %v36 = vld [vmem:[%s0 + $0x70] sm:$0xff]
    %v37 = vld [vmem:[%s0 + $0x78] sm:$0xff]
    %v38 = vld [vmem:[%s0 + $0x80] sm:$0xff]
    %v39 = vld [vmem:[%s0 + $0x88] sm:$0xff]
    %v40 = vld [vmem:[%s0 + $0x90] sm:$0xff]
    %v41 = vld [vmem:[%s0 + $0x98] sm:$0xff]
    %v42 = vld [vmem:[%s0 + $0xa0] sm:$0xff]
    %v43 = vld [vmem:[%s0 + $0xa8] sm:$0xff]
    %v44 = vld [vmem:[%s0 + $0xb0] sm:$0xff]
    %v45 = vld [vmem:[%s0 + $0xb8] sm:$0xff]
    %v46 = vld [vmem:[%s0 + $0xc0] sm:$0xff]
    %v47 = vld [vmem:[%s0 + $0xc8] sm:$0xff]
    %v48 = vld [vmem:[%s0 + $0xd0] sm:$0xff]
    %v49 = vld [vmem:[%s0 + $0xd8] sm:$0xff]
    %v50 = vld [vmem:[%s0 + $0xe0] sm:$0xff]
    %v51 = vld [vmem:[%s0 + $0xe8] sm:$0xff]
    %v52 = vld [vmem:[%s0 + $0xf0] sm:$0xff]
    %v53 = vld [vmem:[%s0 + $0xf8] sm:$0xff]
    %v54 = vpack.c.bf16 %v23, %v22
    %v55 = vpack.c.bf16 %v25, %v24
    %v56 = vpack.c.bf16 %v27, %v26
    %v57 = vpack.c.bf16 %v29, %v28
    %v58 = vpack.c.bf16 %v31, %v30
    %v59 = vpack.c.bf16 %v33, %v32
    %v60 = vpack.c.bf16 %v35, %v34
    %v61 = vpack.c.bf16 %v37, %v36
    %v62 = vpack.c.bf16 %v39, %v38
    %v63 = vpack.c.bf16 %v41, %v40
    %v64 = vpack.c.bf16 %v43, %v42
    %v65 = vpack.c.bf16 %v45, %v44
    %v66 = vpack.c.bf16 %v47, %v46
    %v67 = vpack.c.bf16 %v49, %v48
    %v68 = vpack.c.bf16 %v51, %v50
    %v69 = vpack.c.bf16 %v53, %v52
    %v70 = vld [vmem:[%s1] sm:$0xf]
    %v71 = vld [vmem:[%s1 + $0x4] sm:$0xf]
    %v72 = vld [vmem:[%s1 + $0x8] sm:$0xf]
    %v73 = vld [vmem:[%s1 + $0xc] sm:$0xf]
    %v74 = vld [vmem:[%s3] sm:$0x1]
    %v76 = vperm.slane %v74, 0
    %v82 = vunpack.c.l.b16 %v70
    %v83 = vunpack.c.l.b16 %v71
    %v84 = vunpack.c.l.b16 %v72
    %v85 = vunpack.c.l.b16 %v73
    %v86 = vpack.c.b16 %v83, %v82
    %v87 = vpack.c.b16 %v85, %v84
    %vm90 = vcmask 261120
    %v92 = vsel %vm90, %v54, 0
    %v95 = vsel %vm90, %v55, 0
    %v98 = vsel %vm90, %v56, 0
    %v101 = vsel %vm90, %v57, 0
    %v104 = vsel %vm90, %v58, 0
    %v107 = vsel %vm90, %v59, 0
    %v110 = vsel %vm90, %v60, 0
    %v113 = vsel %vm90, %v61, 0
    %v116 = vsel %vm90, %v62, 0
    %v119 = vsel %vm90, %v63, 0
    %v122 = vsel %vm90, %v64, 0
    %v125 = vsel %vm90, %v65, 0
    %v128 = vsel %vm90, %v66, 0
    %v131 = vsel %vm90, %v67, 0
    %v134 = vsel %vm90, %v68, 0
    %v137 = vsel %vm90, %v69, 0
    %139 = vmatpush.bf16.msra.mxu0 0
    %140 = vmatpush.bf16.msra.mxu0 0
    %141 = vmatpush.bf16.msra.mxu0 0
    %142 = vmatpush.bf16.msra.mxu0 0
    %143 = vmatpush.bf16.msra.mxu0 0
    %144 = vmatpush.bf16.msra.mxu0 0
    %145 = vmatpush.bf16.msra.mxu0 %v87
    %146 = vmatpush.bf16.msra.mxu0 %v86
    %147 = vmatmul.bf16.gmra.mxu0 %v92
    %v148 = vpop.f32.mrf.mxu0
    %v149 = vadd.f32 %v76, %v148
    %v150 = vpop.f32.mrf.mxu0
    %v151 = vadd.f32 %v76, %v150
    %152 = vmatmul.bf16.gmra.mxu0 %v95
    %v153 = vpop.f32.mrf.mxu0
    %v154 = vadd.f32 %v76, %v153
    %v155 = vpop.f32.mrf.mxu0
    %v156 = vadd.f32 %v76, %v155
    %157 = vmatmul.bf16.gmra.mxu0 %v98
    %v158 = vpop.f32.mrf.mxu0
    %v159 = vadd.f32 %v76, %v158
    %v160 = vpop.f32.mrf.mxu0
    %v161 = vadd.f32 %v76, %v160
    %162 = vmatmul.bf16.gmra.mxu0 %v101
    %v163 = vpop.f32.mrf.mxu0
    %v164 = vadd.f32 %v76, %v163
    %v165 = vpop.f32.mrf.mxu0
    %v166 = vadd.f32 %v76, %v165
    %167 = vmatmul.bf16.gmra.mxu0 %v104
    %v168 = vpop.f32.mrf.mxu0
    %v169 = vadd.f32 %v76, %v168
    %v170 = vpop.f32.mrf.mxu0
    %v171 = vadd.f32 %v76, %v170
    %172 = vmatmul.bf16.gmra.mxu0 %v107
    %v173 = vpop.f32.mrf.mxu0
    %v174 = vadd.f32 %v76, %v173
    %v175 = vpop.f32.mrf.mxu0
    %v176 = vadd.f32 %v76, %v175
    %177 = vmatmul.bf16.gmra.mxu0 %v110
    %v178 = vpop.f32.mrf.mxu0
    %v179 = vadd.f32 %v76, %v178
    %v180 = vpop.f32.mrf.mxu0
    %v181 = vadd.f32 %v76, %v180
    %182 = vmatmul.bf16.gmra.mxu0 %v113
    %v183 = vpop.f32.mrf.mxu0
    %v184 = vadd.f32 %v76, %v183
    %v185 = vpop.f32.mrf.mxu0
    %v186 = vadd.f32 %v76, %v185
    %187 = vmatmul.bf16.gmra.mxu0 %v116
    %v188 = vpop.f32.mrf.mxu0
    %v189 = vadd.f32 %v76, %v188
    %v190 = vpop.f32.mrf.mxu0
    %v191 = vadd.f32 %v76, %v190
    %192 = vmatmul.bf16.gmra.mxu0 %v119
    %v193 = vpop.f32.mrf.mxu0
    %v194 = vadd.f32 %v76, %v193
    %v195 = vpop.f32.mrf.mxu0
    %v196 = vadd.f32 %v76, %v195
    %197 = vmatmul.bf16.gmra.mxu0 %v122
    %v198 = vpop.f32.mrf.mxu0
    %v199 = vadd.f32 %v76, %v198
    %v200 = vpop.f32.mrf.mxu0
    %v201 = vadd.f32 %v76, %v200
    %202 = vmatmul.bf16.gmra.mxu0 %v125
    %v203 = vpop.f32.mrf.mxu0
    %v204 = vadd.f32 %v76, %v203
    %v205 = vpop.f32.mrf.mxu0
    %v206 = vadd.f32 %v76, %v205
    %207 = vmatmul.bf16.gmra.mxu0 %v128
    %v208 = vpop.f32.mrf.mxu0
    %v209 = vadd.f32 %v76, %v208
    %v210 = vpop.f32.mrf.mxu0
    %v211 = vadd.f32 %v76, %v210
    %212 = vmatmul.bf16.gmra.mxu0 %v131
    %v213 = vpop.f32.mrf.mxu0
    %v214 = vadd.f32 %v76, %v213
    %v215 = vpop.f32.mrf.mxu0
    %v216 = vadd.f32 %v76, %v215
    %217 = vmatmul.bf16.gmra.mxu0 %v134
    %v218 = vpop.f32.mrf.mxu0
    %v219 = vadd.f32 %v76, %v218
    %v220 = vpop.f32.mrf.mxu0
    %v221 = vadd.f32 %v76, %v220
    %222 = vmatmul.bf16.gmra.mxu0 %v137
    %v223 = vpop.f32.mrf.mxu0
    %v224 = vadd.f32 %v76, %v223
    %v225 = vpop.f32.mrf.mxu0
    %v226 = vadd.f32 %v76, %v225
    %227 = vdwg.mxu0
    %v228 = vmax.f32 %v149, 0.0
    %v229 = vmax.f32 %v151, 0.0
    %v230 = vmax.f32 %v154, 0.0
    %v231 = vmax.f32 %v156, 0.0
    %v232 = vmax.f32 %v159, 0.0
    %v233 = vmax.f32 %v161, 0.0
    %v234 = vmax.f32 %v164, 0.0
    %v235 = vmax.f32 %v166, 0.0
    %v236 = vmax.f32 %v169, 0.0
    %v237 = vmax.f32 %v171, 0.0
    %v238 = vmax.f32 %v174, 0.0
    %v239 = vmax.f32 %v176, 0.0
    %v240 = vmax.f32 %v179, 0.0
    %v241 = vmax.f32 %v181, 0.0
    %v242 = vmax.f32 %v184, 0.0
    %v243 = vmax.f32 %v186, 0.0
    %v244 = vmax.f32 %v189, 0.0
    %v245 = vmax.f32 %v191, 0.0
    %v246 = vmax.f32 %v194, 0.0
    %v247 = vmax.f32 %v196, 0.0
    %v248 = vmax.f32 %v199, 0.0
    %v249 = vmax.f32 %v201, 0.0
    %v250 = vmax.f32 %v204, 0.0
    %v251 = vmax.f32 %v206, 0.0
    %v252 = vmax.f32 %v209, 0.0
    %v253 = vmax.f32 %v211, 0.0
    %v254 = vmax.f32 %v214, 0.0
    %v255 = vmax.f32 %v216, 0.0
    %v256 = vmax.f32 %v219, 0.0
    %v257 = vmax.f32 %v221, 0.0
    %v258 = vmax.f32 %v224, 0.0
    %v259 = vmax.f32 %v226, 0.0
    %v260 = vpack.c.bf16 %v229, %v228
    %v261 = vpack.c.bf16 %v231, %v230
    %v262 = vpack.c.bf16 %v233, %v232
    %v263 = vpack.c.bf16 %v235, %v234
    %v264 = vpack.c.bf16 %v237, %v236
    %v265 = vpack.c.bf16 %v239, %v238
    %v266 = vpack.c.bf16 %v241, %v240
    %v267 = vpack.c.bf16 %v243, %v242
    %v268 = vpack.c.bf16 %v245, %v244
    %v269 = vpack.c.bf16 %v247, %v246
    %v270 = vpack.c.bf16 %v249, %v248
    %v271 = vpack.c.bf16 %v251, %v250
    %v272 = vpack.c.bf16 %v253, %v252
    %v273 = vpack.c.bf16 %v255, %v254
    %v274 = vpack.c.bf16 %v257, %v256
    %v275 = vpack.c.bf16 %v259, %v258
    %v276 = vld [vmem:[%s2] sm:$0xf]
    %v277 = vld [vmem:[%s2 + $0x4] sm:$0xf]
    %v278 = vld [vmem:[%s2 + $0x8] sm:$0xf]
    %v279 = vld [vmem:[%s2 + $0xc] sm:$0xf]
    %v280 = vld [vmem:[%s2 + $0x10] sm:$0xf]
    %v281 = vld [vmem:[%s2 + $0x14] sm:$0xf]
    %v282 = vld [vmem:[%s2 + $0x18] sm:$0xf]
    %v283 = vld [vmem:[%s2 + $0x1c] sm:$0xf]
    %v284 = vld [vmem:[%s4] sm:$0x1]
    %v286 = vperm.slane %v284, 0
    %v296 = vunpack.c.l.b16 %v276
    %v297 = vunpack.c.l.b16 %v277
    %v298 = vunpack.c.l.b16 %v278
    %v299 = vunpack.c.l.b16 %v279
    %v300 = vunpack.c.l.b16 %v280
    %v301 = vunpack.c.l.b16 %v281
    %v302 = vunpack.c.l.b16 %v282
    %v303 = vunpack.c.l.b16 %v283
    %v304 = vpack.c.b16 %v297, %v296
    %v305 = vpack.c.b16 %v299, %v298
    %v306 = vpack.c.b16 %v301, %v300
    %v307 = vpack.c.b16 %v303, %v302
    %vm312 = vcmask 523264
    %v314 = vsel %vm312, %v260, 0
    %v317 = vsel %vm312, %v261, 0
    %v320 = vsel %vm312, %v262, 0
    %v323 = vsel %vm312, %v263, 0
    %v326 = vsel %vm312, %v264, 0
    %v329 = vsel %vm312, %v265, 0
    %v332 = vsel %vm312, %v266, 0
    %v335 = vsel %vm312, %v267, 0
    %v338 = vsel %vm312, %v268, 0
    %v341 = vsel %vm312, %v269, 0
    %v344 = vsel %vm312, %v270, 0
    %v347 = vsel %vm312, %v271, 0
    %v350 = vsel %vm312, %v272, 0
    %v353 = vsel %vm312, %v273, 0
    %v356 = vsel %vm312, %v274, 0
    %v359 = vsel %vm312, %v275, 0
    %361 = vmatpush.bf16.msra.mxu0 0
    %362 = vmatpush.bf16.msra.mxu0 0
    %363 = vmatpush.bf16.msra.mxu0 0
    %364 = vmatpush.bf16.msra.mxu0 0
    %365 = vmatpush.bf16.msra.mxu0 %v307
    %366 = vmatpush.bf16.msra.mxu0 %v306
    %367 = vmatpush.bf16.msra.mxu0 %v305
    %368 = vmatpush.bf16.msra.mxu0 %v304
    %369 = vmatmul.bf16.gmra.mxu0 %v314
    %v370 = vpop.f32.mrf.mxu0
    %v371 = vadd.f32 %v286, %v370
    %v372 = vpop.f32.mrf.mxu0
    %v373 = vadd.f32 %v286, %v372
    %374 = vmatmul.bf16.gmra.mxu0 %v317
    %v375 = vpop.f32.mrf.mxu0
    %v376 = vadd.f32 %v286, %v375
    %v377 = vpop.f32.mrf.mxu0
    %v378 = vadd.f32 %v286, %v377
    %379 = vmatmul.bf16.gmra.mxu0 %v320
    %v380 = vpop.f32.mrf.mxu0
    %v381 = vadd.f32 %v286, %v380
    %v382 = vpop.f32.mrf.mxu0
    %v383 = vadd.f32 %v286, %v382
    %384 = vmatmul.bf16.gmra.mxu0 %v323
    %v385 = vpop.f32.mrf.mxu0
    %v386 = vadd.f32 %v286, %v385
    %v387 = vpop.f32.mrf.mxu0
    %v388 = vadd.f32 %v286, %v387
    %389 = vmatmul.bf16.gmra.mxu0 %v326
    %v390 = vpop.f32.mrf.mxu0
    %v391 = vadd.f32 %v286, %v390
    %v392 = vpop.f32.mrf.mxu0
    %v393 = vadd.f32 %v286, %v392
    %394 = vmatmul.bf16.gmra.mxu0 %v329
    %v395 = vpop.f32.mrf.mxu0
    %v396 = vadd.f32 %v286, %v395
    %v397 = vpop.f32.mrf.mxu0
    %v398 = vadd.f32 %v286, %v397
    %399 = vmatmul.bf16.gmra.mxu0 %v332
    %v400 = vpop.f32.mrf.mxu0
    %v401 = vadd.f32 %v286, %v400
    %v402 = vpop.f32.mrf.mxu0
    %v403 = vadd.f32 %v286, %v402
    %404 = vmatmul.bf16.gmra.mxu0 %v335
    %v405 = vpop.f32.mrf.mxu0
    %v406 = vadd.f32 %v286, %v405
    %v407 = vpop.f32.mrf.mxu0
    %v408 = vadd.f32 %v286, %v407
    %409 = vmatmul.bf16.gmra.mxu0 %v338
    %v410 = vpop.f32.mrf.mxu0
    %v411 = vadd.f32 %v286, %v410
    %v412 = vpop.f32.mrf.mxu0
    %v413 = vadd.f32 %v286, %v412
    %414 = vmatmul.bf16.gmra.mxu0 %v341
    %v415 = vpop.f32.mrf.mxu0
    %v416 = vadd.f32 %v286, %v415
    %v417 = vpop.f32.mrf.mxu0
    %v418 = vadd.f32 %v286, %v417
    %419 = vmatmul.bf16.gmra.mxu0 %v344
    %v420 = vpop.f32.mrf.mxu0
    %v421 = vadd.f32 %v286, %v420
    %v422 = vpop.f32.mrf.mxu0
    %v423 = vadd.f32 %v286, %v422
    %424 = vmatmul.bf16.gmra.mxu0 %v347
    %v425 = vpop.f32.mrf.mxu0
    %v426 = vadd.f32 %v286, %v425
    %v427 = vpop.f32.mrf.mxu0
    %v428 = vadd.f32 %v286, %v427
    %429 = vmatmul.bf16.gmra.mxu0 %v350
    %v430 = vpop.f32.mrf.mxu0
    %v431 = vadd.f32 %v286, %v430
    %v432 = vpop.f32.mrf.mxu0
    %v433 = vadd.f32 %v286, %v432
    %434 = vmatmul.bf16.gmra.mxu0 %v353
    %v435 = vpop.f32.mrf.mxu0
    %v436 = vadd.f32 %v286, %v435
    %v437 = vpop.f32.mrf.mxu0
    %v438 = vadd.f32 %v286, %v437
    %439 = vmatmul.bf16.gmra.mxu0 %v356
    %v440 = vpop.f32.mrf.mxu0
    %v441 = vadd.f32 %v286, %v440
    %v442 = vpop.f32.mrf.mxu0
    %v443 = vadd.f32 %v286, %v442
    %444 = vmatmul.bf16.gmra.mxu0 %v359
    %v445 = vpop.f32.mrf.mxu0
    %v446 = vadd.f32 %v286, %v445
    %v447 = vpop.f32.mrf.mxu0
    %v448 = vadd.f32 %v286, %v447
    %449 = vdwg.mxu0
    %v450 = vmax.f32 %v371, 0.0
    %v451 = vmax.f32 %v373, 0.0
    %v452 = vmax.f32 %v376, 0.0
    %v453 = vmax.f32 %v378, 0.0
    %v454 = vmax.f32 %v381, 0.0
    %v455 = vmax.f32 %v383, 0.0
    %v456 = vmax.f32 %v386, 0.0
    %v457 = vmax.f32 %v388, 0.0
    %v458 = vmax.f32 %v391, 0.0
    %v459 = vmax.f32 %v393, 0.0
    %v460 = vmax.f32 %v396, 0.0
    %v461 = vmax.f32 %v398, 0.0
    %v462 = vmax.f32 %v401, 0.0
    %v463 = vmax.f32 %v403, 0.0
    %v464 = vmax.f32 %v406, 0.0
    %v465 = vmax.f32 %v408, 0.0
    %v466 = vmax.f32 %v411, 0.0
    %v467 = vmax.f32 %v413, 0.0
    %v468 = vmax.f32 %v416, 0.0
    %v469 = vmax.f32 %v418, 0.0
    %v470 = vmax.f32 %v421, 0.0
    %v471 = vmax.f32 %v423, 0.0
    %v472 = vmax.f32 %v426, 0.0
    %v473 = vmax.f32 %v428, 0.0
    %v474 = vmax.f32 %v431, 0.0
    %v475 = vmax.f32 %v433, 0.0
    %v476 = vmax.f32 %v436, 0.0
    %v477 = vmax.f32 %v438, 0.0
    %v478 = vmax.f32 %v441, 0.0
    %v479 = vmax.f32 %v443, 0.0
    %v480 = vmax.f32 %v446, 0.0
    %v481 = vmax.f32 %v448, 0.0
    %v482 = vsel %vm312, %v450, -inf
    %v483 = vsel %vm312, %v451, -inf
    %v484 = vmax.f32 %v482, %v483
    %v485 = vrot.slane %v484, 4
    %v486 = vmax.f32 %v484, %v485
    %v487 = vrot.slane %v486, 2
    %v488 = vmax.f32 %v486, %v487
    %v489 = vrot.slane %v488, 1
    %v490 = vmax.f32 %v488, %v489
    %v491 = vsel %vm312, %v452, -inf
    %v492 = vsel %vm312, %v453, -inf
    %v493 = vmax.f32 %v491, %v492
    %v494 = vrot.slane %v493, 4
    %v495 = vmax.f32 %v493, %v494
    %v496 = vrot.slane %v495, 2
    %v497 = vmax.f32 %v495, %v496
    %v498 = vrot.slane %v497, 1
    %v499 = vmax.f32 %v497, %v498
    %v500 = vsel %vm312, %v454, -inf
    %v501 = vsel %vm312, %v455, -inf
    %v502 = vmax.f32 %v500, %v501
    %v503 = vrot.slane %v502, 4
    %v504 = vmax.f32 %v502, %v503
    %v505 = vrot.slane %v504, 2
    %v506 = vmax.f32 %v504, %v505
    %v507 = vrot.slane %v506, 1
    %v508 = vmax.f32 %v506, %v507
    %v509 = vsel %vm312, %v456, -inf
    %v510 = vsel %vm312, %v457, -inf
    %v511 = vmax.f32 %v509, %v510
    %v512 = vrot.slane %v511, 4
    %v513 = vmax.f32 %v511, %v512
    %v514 = vrot.slane %v513, 2
    %v515 = vmax.f32 %v513, %v514
    %v516 = vrot.slane %v515, 1
    %v517 = vmax.f32 %v515, %v516
    %v518 = vsel %vm312, %v458, -inf
    %v519 = vsel %vm312, %v459, -inf
    %v520 = vmax.f32 %v518, %v519
    %v521 = vrot.slane %v520, 4
    %v522 = vmax.f32 %v520, %v521
    %v523 = vrot.slane %v522, 2
    %v524 = vmax.f32 %v522, %v523
    %v525 = vrot.slane %v524, 1
    %v526 = vmax.f32 %v524, %v525
    %v527 = vsel %vm312, %v460, -inf
    %v528 = vsel %vm312, %v461, -inf
    %v529 = vmax.f32 %v527, %v528
    %v530 = vrot.slane %v529, 4
    %v531 = vmax.f32 %v529, %v530
    %v532 = vrot.slane %v531, 2
    %v533 = vmax.f32 %v531, %v532
    %v534 = vrot.slane %v533, 1
    %v535 = vmax.f32 %v533, %v534
    %v536 = vsel %vm312, %v462, -inf
    %v537 = vsel %vm312, %v463, -inf
    %v538 = vmax.f32 %v536, %v537
    %v539 = vrot.slane %v538, 4
    %v540 = vmax.f32 %v538, %v539
    %v541 = vrot.slane %v540, 2
    %v542 = vmax.f32 %v540, %v541
    %v543 = vrot.slane %v542, 1
    %v544 = vmax.f32 %v542, %v543
    %v545 = vsel %vm312, %v464, -inf
    %v546 = vsel %vm312, %v465, -inf
    %v547 = vmax.f32 %v545, %v546
    %v548 = vrot.slane %v547, 4
    %v549 = vmax.f32 %v547, %v548
    %v550 = vrot.slane %v549, 2
    %v551 = vmax.f32 %v549, %v550
    %v552 = vrot.slane %v551, 1
    %v553 = vmax.f32 %v551, %v552
    %v554 = vsel %vm312, %v466, -inf
    %v555 = vsel %vm312, %v467, -inf
    %v556 = vmax.f32 %v554, %v555
    %v557 = vrot.slane %v556, 4
    %v558 = vmax.f32 %v556, %v557
    %v559 = vrot.slane %v558, 2
    %v560 = vmax.f32 %v558, %v559
    %v561 = vrot.slane %v560, 1
    %v562 = vmax.f32 %v560, %v561
    %v563 = vsel %vm312, %v468, -inf
    %v564 = vsel %vm312, %v469, -inf
    %v565 = vmax.f32 %v563, %v564
    %v566 = vrot.slane %v565, 4
    %v567 = vmax.f32 %v565, %v566
    %v568 = vrot.slane %v567, 2
    %v569 = vmax.f32 %v567, %v568
    %v570 = vrot.slane %v569, 1
    %v571 = vmax.f32 %v569, %v570
    %v572 = vsel %vm312, %v470, -inf
    %v573 = vsel %vm312, %v471, -inf
    %v574 = vmax.f32 %v572, %v573
    %v575 = vrot.slane %v574, 4
    %v576 = vmax.f32 %v574, %v575
    %v577 = vrot.slane %v576, 2
    %v578 = vmax.f32 %v576, %v577
    %v579 = vrot.slane %v578, 1
    %v580 = vmax.f32 %v578, %v579
    %v581 = vsel %vm312, %v472, -inf
    %v582 = vsel %vm312, %v473, -inf
    %v583 = vmax.f32 %v581, %v582
    %v584 = vrot.slane %v583, 4
    %v585 = vmax.f32 %v583, %v584
    %v586 = vrot.slane %v585, 2
    %v587 = vmax.f32 %v585, %v586
    %v588 = vrot.slane %v587, 1
    %v589 = vmax.f32 %v587, %v588
    %v590 = vsel %vm312, %v474, -inf
    %v591 = vsel %vm312, %v475, -inf
    %v592 = vmax.f32 %v590, %v591
    %v593 = vrot.slane %v592, 4
    %v594 = vmax.f32 %v592, %v593
    %v595 = vrot.slane %v594, 2
    %v596 = vmax.f32 %v594, %v595
    %v597 = vrot.slane %v596, 1
    %v598 = vmax.f32 %v596, %v597
    %v599 = vsel %vm312, %v476, -inf
    %v600 = vsel %vm312, %v477, -inf
    %v601 = vmax.f32 %v599, %v600
    %v602 = vrot.slane %v601, 4
    %v603 = vmax.f32 %v601, %v602
    %v604 = vrot.slane %v603, 2
    %v605 = vmax.f32 %v603, %v604
    %v606 = vrot.slane %v605, 1
    %v607 = vmax.f32 %v605, %v606
    %v608 = vsel %vm312, %v478, -inf
    %v609 = vsel %vm312, %v479, -inf
    %v610 = vmax.f32 %v608, %v609
    %v611 = vrot.slane %v610, 4
    %v612 = vmax.f32 %v610, %v611
    %v613 = vrot.slane %v612, 2
    %v614 = vmax.f32 %v612, %v613
    %v615 = vrot.slane %v614, 1
    %v616 = vmax.f32 %v614, %v615
    %v617 = vsel %vm312, %v480, -inf
    %v618 = vsel %vm312, %v481, -inf
    %v619 = vmax.f32 %v617, %v618
    %v620 = vrot.slane %v619, 4
    %v621 = vmax.f32 %v619, %v620
    %v622 = vrot.slane %v621, 2
    %v623 = vmax.f32 %v621, %v622
    %v624 = vrot.slane %v623, 1
    %v625 = vmax.f32 %v623, %v624
    %vm642 = vcmask 1041409
    %v643 = vsel %vm642, %v499, %v490
    %vm644 = vcmask 1042434
    %v645 = vsel %vm644, %v508, %v643
    %vm646 = vcmask 1043459
    %v647 = vsel %vm646, %v517, %v645
    %vm648 = vcmask 1044484
    %v649 = vsel %vm648, %v526, %v647
    %vm650 = vcmask 1045509
    %v651 = vsel %vm650, %v535, %v649
    %vm652 = vcmask 1046534
    %v653 = vsel %vm652, %v544, %v651
    %vm654 = vcmask 1047559
    %v655 = vsel %vm654, %v553, %v653
    %v656 = vsel %vm642, %v571, %v562
    %v657 = vsel %vm644, %v580, %v656
    %v658 = vsel %vm646, %v589, %v657
    %v659 = vsel %vm648, %v598, %v658
    %v660 = vsel %vm650, %v607, %v659
    %v661 = vsel %vm652, %v616, %v660
    %v662 = vsel %vm654, %v625, %v661
    %665 = vst.msk [vmem:[#allocation2] sm:$0xff] %vm312, %v655
    %666 = vst.msk [vmem:[#allocation2 + $0x8] sm:$0xff] %vm312, %v662
    // Predicated region
    $region22: #{tpu_custom_call.1} parent=1 // pred_check
      _
    $region23: #{tpu_custom_call.1} parent=1 // pred_check_branch
      %668 = sbr.rel (0) target = $region25
    $region24: #{tpu_custom_call.1} parent=1 // pred_region
      %670 = vsyncadd [#allocation3], 0
      %s671 = sshll.u32 [#allocation2], 4
      %s672 = int_to_ptr.vmem [resolvable:$true] %s671
      %s673 = sshll.u32 %s5, 4
      %s674 = int_to_ptr.hbm [resolvable:$true] %s673
      %679 = dma.vmem_to_hbm [thread:$0]  %s672, 256, %s674, [#allocation3], 128, 128, 8
    $region25: #{tpu_custom_call.1} parent=1 // pred_fallthru
      _
    // Predicated region
    $region26: #{tpu_custom_call.1} parent=1 // pred_check
      _
    $region27: #{tpu_custom_call.1} parent=1 // pred_check_branch
      %681 = sbr.rel (0) target = $region29
    $region28: #{tpu_custom_call.1} parent=1 // pred_region
      %683 = dma.done [#allocation3], 256
    $region29: #{tpu_custom_call.1} parent=1 // pred_fallthru
      _
    %684 = vsyncpa [#allocation3], 1

</llo_original>
